<compile_context>
chip_gen: v5e
topology: v5e:2x2
jax: 0.10.0
libtpu: 0.0.40
codegen_flags: <defaults>
</compile_context>

<pallas_src>
import functools

import jax
import jax.numpy as jnp
from jax.experimental import pallas as pl
from jax.experimental.pallas import tpu as pltpu

_LANE = 128


def _fixed_mlp_kernel(x_ref,
                      w1_ref, b1_ref,
                      w2_ref, b2_ref,
                      w3_ref, b3_ref,
                      w4t_ref, b4_ref,
                      o_ref, *, act_dtype):
    # x tile: [2, TB] (batch lane-dense).
    x = x_ref[...]
    w1 = w1_ref[...]                                                        # [8, 2]

    # Layer 1 (in=2): two broadcast-MACs on the VPU; MXU with K=2 buys nothing.
    z = w1[:, 0:1] * x[0:1, :] + w1[:, 1:2] * x[1:2, :] + b1_ref[...]       # [8, TB] f32
    h = jnp.tanh(z.astype(act_dtype))

    # Layers 2/3 on the MXU (f32 accumulation), batch stays on the lane axis.
    z = jnp.dot(w2_ref[...].astype(h.dtype), h,
                preferred_element_type=jnp.float32) + b2_ref[...]           # [16, TB] f32
    h = jnp.tanh(z.astype(act_dtype))
    z = jnp.dot(w3_ref[...].astype(h.dtype), h,
                preferred_element_type=jnp.float32) + b3_ref[...]           # [16, TB] f32
    h = jnp.tanh(z.astype(act_dtype))

    # Layer 4 (out=1): sublane reduction instead of a 1-row MXU result pop.
    out = (jnp.sum(w4t_ref[...] * h.astype(jnp.float32), axis=0, keepdims=True)
           + b4_ref[...])                                                   # [1, TB]
    o_ref[...] = out.astype(o_ref.dtype)


@functools.partial(jax.jit, static_argnames=("tb", "act_dtype", "x_feature_major"))
def fixed_mlp(x, params, tb=16384, act_dtype=jnp.float32, x_feature_major=False):
    """FixedMLP forward.

    x: [B, 2] f32 (or [2, B] if x_feature_major=True).  Returns [B, 1] f32.
    params: torch-layout weights w_i [out, in], biases b_i [out].
    """
    if x_feature_major:
        xt = x                                  # already [2, B]; no transpose pass
        B = x.shape[1]
    else:
        B = x.shape[0]
        xt = jnp.transpose(x)                   # fuses with the pad under jit

    # ---- static tile-size selection (B, tb are Python ints under jit) ----
    B_pad128 = pl.cdiv(B, _LANE) * _LANE
    tb = max(_LANE, (int(tb) // _LANE) * _LANE)              # multiple of 128
    if B_pad128 > _LANE:
        # Guarantee >= 2 grid steps so both v7x TensorCores get work.
        tb = min(tb, pl.cdiv(B_pad128, 2 * _LANE) * _LANE)
    tb = min(tb, B_pad128)
    B_pad = pl.cdiv(B, tb) * tb

    if B_pad != B:
        xt = jnp.pad(xt, ((0, 0), (0, B_pad - B)))

    w1, w2, w3 = params["w1"], params["w2"], params["w3"]    # [out, in]
    w4t = jnp.transpose(params["w4"])                        # [16, 1]
    b1 = params["b1"].reshape(-1, 1)                         # [8, 1]
    b2 = params["b2"].reshape(-1, 1)                         # [16, 1]
    b3 = params["b3"].reshape(-1, 1)                         # [16, 1]
    b4 = params["b4"].reshape(1, 1)                          # [1, 1]

    const = lambda shape: pl.BlockSpec(shape, lambda i: (0, 0))   # VMEM-resident params

    out = pl.pallas_call(
        functools.partial(_fixed_mlp_kernel, act_dtype=act_dtype),
        out_shape=jax.ShapeDtypeStruct((1, B_pad), jnp.float32),
        grid=(B_pad // tb,),
        in_specs=[
            pl.BlockSpec((2, tb), lambda i: (0, i)),         # x^T batch tile
            const(w1.shape), const(b1.shape),
            const(w2.shape), const(b2.shape),
            const(w3.shape), const(b3.shape),
            const(w4t.shape), const(b4.shape),
        ],
        out_specs=pl.BlockSpec((1, tb), lambda i: (0, i)),   # lane-dense output
        compiler_params=pltpu.CompilerParams(
            dimension_semantics=("parallel",),
            vmem_limit_bytes=32 * 1024 * 1024,               # explicit; safe on v5e/v6e/v7x
        ),
    )(xt, w1, b1, w2, b2, w3, b3, w4t, b4)

    return jnp.transpose(out[:, :B])                         # [B, 1]


def init_params(key):
    """Torch-layout init: weight[out, in] ~ U(0, 3.14); bias ~ U(-1/sqrt(fan_in), +)."""
    dims = [(2, 8), (8, 16), (16, 16), (16, 1)]
    params = {}
    keys = jax.random.split(key, 2 * len(dims))
    for i, (fan_in, fan_out) in enumerate(dims):
        wk, bk = keys[2 * i], keys[2 * i + 1]
        w = jax.random.uniform(wk, (fan_out, fan_in), jnp.float32, 0.0, 3.14)
        bound = 1.0 / jnp.sqrt(jnp.float32(fan_in))
        b = jax.random.uniform(bk, (fan_out,), jnp.float32, -bound, bound)
        params[f"w{i + 1}"] = w      # [out, in]  (torch nn.Linear layout)
        params[f"b{i + 1}"] = b      # [out]
    return params


def reference_mlp(x, params):
    h = x
    for i in range(1, 4):
        h = jnp.tanh(h @ params[f"w{i}"].T + params[f"b{i}"])
    return h @ params["w4"].T + params["b4"]


if __name__ == "__main__":
    key = jax.random.PRNGKey(0)
    pkey, k1, k2, k3 = jax.random.split(key, 4)
    params = init_params(pkey)

    # Main small test (batch=8 -> one 128-wide lane tile).
    x = jax.random.normal(k1, (8, 2), jnp.float32)
    out = jax.block_until_ready(fixed_mlp(x, params))
    ref = reference_mlp(x, params)
    assert out.shape == (8, 1), out.shape
    assert jnp.allclose(out, ref, atol=1e-5, rtol=1e-4), "mismatch (B=8)"

    # Multi-step grid + padding + non-multiple-of-128 tb (rounded to 256 -> grid=(2,)).
    x2 = jax.random.normal(k2, (300, 2), jnp.float32)
    out2 = jax.block_until_ready(fixed_mlp(x2, params, tb=300))
    ref2 = reference_mlp(x2, params)
    assert out2.shape == (300, 1), out2.shape
    assert jnp.allclose(out2, ref2, atol=1e-5, rtol=1e-4), "mismatch (B=300)"

    # Larger batch, default tile (clamped to >=2 grid steps), feature-major input path
    # (no wrapper-side transpose HBM pass).
    x3 = jax.random.normal(k3, (4096, 2), jnp.float32)
    out3 = jax.block_until_ready(
        fixed_mlp(jnp.transpose(x3), params, x_feature_major=True))
    ref3 = reference_mlp(x3, params)
    assert out3.shape == (4096, 1), out3.shape
    assert jnp.allclose(out3, ref3, atol=1e-5, rtol=1e-4), "mismatch (B=4096)"

    # bf16-activation variant (v6e/v7x EUP throughput); accuracy trade-off, so smoke-check only.
    out_bf16 = jax.block_until_ready(fixed_mlp(x3, params, act_dtype=jnp.bfloat16))
    assert out_bf16.shape == (4096, 1), out_bf16.shape
    assert bool(jnp.isfinite(out_bf16).all()), "non-finite bf16 output"

    print("KERNEL_OK")
</pallas_src>

<mosaic_0001>
module attributes {stable_mosaic.version = 11 : i64} {
  func.func @_fixed_mlp_kernel(%arg0: i32, %arg1: memref<2x128xf32, #tpu.memory_space<vmem>>, %arg2: memref<8x2xf32, #tpu.memory_space<vmem>>, %arg3: memref<8x1xf32, #tpu.memory_space<vmem>>, %arg4: memref<16x8xf32, #tpu.memory_space<vmem>>, %arg5: memref<16x1xf32, #tpu.memory_space<vmem>>, %arg6: memref<16x16xf32, #tpu.memory_space<vmem>>, %arg7: memref<16x1xf32, #tpu.memory_space<vmem>>, %arg8: memref<16x1xf32, #tpu.memory_space<vmem>>, %arg9: memref<1x1xf32, #tpu.memory_space<vmem>>, %arg10: memref<1x128xf32, #tpu.memory_space<vmem>>) attributes {dimension_semantics = [#tpu.dimension_semantics<parallel>], iteration_bounds = array<i64: 1>, scalar_prefetch = 0 : i64, scratch_operands = 0 : i64, tpu.core_type = #tpu.core_type<tc>, window_params = [{transform_indices = @transform_0, window_bounds = array<i64: 2, 128>}, {pipeline_mode = #tpu.pipeline_mode<synchronous>, transform_indices = @transform_1, window_bounds = array<i64: 8, 2>}, {pipeline_mode = #tpu.pipeline_mode<synchronous>, transform_indices = @transform_2, window_bounds = array<i64: 8, 1>}, {pipeline_mode = #tpu.pipeline_mode<synchronous>, transform_indices = @transform_3, window_bounds = array<i64: 16, 8>}, {pipeline_mode = #tpu.pipeline_mode<synchronous>, transform_indices = @transform_4, window_bounds = array<i64: 16, 1>}, {pipeline_mode = #tpu.pipeline_mode<synchronous>, transform_indices = @transform_5, window_bounds = array<i64: 16, 16>}, {pipeline_mode = #tpu.pipeline_mode<synchronous>, transform_indices = @transform_6, window_bounds = array<i64: 16, 1>}, {pipeline_mode = #tpu.pipeline_mode<synchronous>, transform_indices = @transform_7, window_bounds = array<i64: 16, 1>}, {pipeline_mode = #tpu.pipeline_mode<synchronous>, transform_indices = @transform_8, window_bounds = array<i64: 1, 1>}, {transform_indices = @transform_9, window_bounds = array<i64: 1, 128>}]} {
    %c0 = arith.constant 0 : index
    %c0_0 = arith.constant 0 : index
    %0 = vector.load %arg1[%c0, %c0_0] : memref<2x128xf32, #tpu.memory_space<vmem>>, vector<2x128xf32>
    %c0_1 = arith.constant 0 : index
    %c0_2 = arith.constant 0 : index
    %1 = vector.load %arg2[%c0_1, %c0_2] : memref<8x2xf32, #tpu.memory_space<vmem>>, vector<8x2xf32>
    %2 = vector.extract_strided_slice %1 {offsets = [0, 0], sizes = [8, 1], strides = [1, 1]} : vector<8x2xf32> to vector<8x1xf32>
    %3 = vector.extract_strided_slice %0 {offsets = [0, 0], sizes = [1, 128], strides = [1, 1]} : vector<2x128xf32> to vector<1x128xf32>
    %4 = vector.broadcast %2 : vector<8x1xf32> to vector<8x128xf32>
    %5 = vector.broadcast %3 : vector<1x128xf32> to vector<8x128xf32>
    %6 = arith.mulf %4, %5 : vector<8x128xf32>
    %7 = vector.extract_strided_slice %1 {offsets = [0, 1], sizes = [8, 1], strides = [1, 1]} : vector<8x2xf32> to vector<8x1xf32>
    %8 = vector.extract_strided_slice %0 {offsets = [1, 0], sizes = [1, 128], strides = [1, 1]} : vector<2x128xf32> to vector<1x128xf32>
    %9 = vector.broadcast %7 : vector<8x1xf32> to vector<8x128xf32>
    %10 = vector.broadcast %8 : vector<1x128xf32> to vector<8x128xf32>
    %11 = arith.mulf %9, %10 : vector<8x128xf32>
    %12 = arith.addf %6, %11 : vector<8x128xf32>
    %c0_3 = arith.constant 0 : index
    %c0_4 = arith.constant 0 : index
    %13 = vector.load %arg3[%c0_3, %c0_4] : memref<8x1xf32, #tpu.memory_space<vmem>>, vector<8x1xf32>
    %14 = vector.broadcast %13 : vector<8x1xf32> to vector<8x128xf32>
    %15 = arith.addf %12, %14 : vector<8x128xf32>
    %16 = math.tanh %15 : vector<8x128xf32>
    %c0_5 = arith.constant 0 : index
    %c0_6 = arith.constant 0 : index
    %17 = vector.load %arg4[%c0_5, %c0_6] : memref<16x8xf32, #tpu.memory_space<vmem>>, vector<16x8xf32>
    %cst = arith.constant dense<0.000000e+00> : vector<16x128xf32>
    %18 = tpu.matmul %17, %16, %cst {dimension_numbers = #tpu.dot_dimension_numbers<[1], [0], [0], [1], [0, 0, 1, 1], [], []>} : vector<16x8xf32>, vector<8x128xf32>, vector<16x128xf32> -> vector<16x128xf32>
    %c0_7 = arith.constant 0 : index
    %c0_8 = arith.constant 0 : index
    %19 = vector.load %arg5[%c0_7, %c0_8] : memref<16x1xf32, #tpu.memory_space<vmem>>, vector<16x1xf32>
    %20 = vector.broadcast %19 : vector<16x1xf32> to vector<16x128xf32>
    %21 = arith.addf %18, %20 : vector<16x128xf32>
    %22 = math.tanh %21 : vector<16x128xf32>
    %c0_9 = arith.constant 0 : index
    %c0_10 = arith.constant 0 : index
    %23 = vector.load %arg6[%c0_9, %c0_10] : memref<16x16xf32, #tpu.memory_space<vmem>>, vector<16x16xf32>
    %cst_11 = arith.constant dense<0.000000e+00> : vector<16x128xf32>
    %24 = tpu.matmul %23, %22, %cst_11 {dimension_numbers = #tpu.dot_dimension_numbers<[1], [0], [0], [1], [0, 0, 1, 1], [], []>} : vector<16x16xf32>, vector<16x128xf32>, vector<16x128xf32> -> vector<16x128xf32>
    %c0_12 = arith.constant 0 : index
    %c0_13 = arith.constant 0 : index
    %25 = vector.load %arg7[%c0_12, %c0_13] : memref<16x1xf32, #tpu.memory_space<vmem>>, vector<16x1xf32>
    %26 = vector.broadcast %25 : vector<16x1xf32> to vector<16x128xf32>
    %27 = arith.addf %24, %26 : vector<16x128xf32>
    %28 = math.tanh %27 : vector<16x128xf32>
    %c0_14 = arith.constant 0 : index
    %c0_15 = arith.constant 0 : index
    %29 = vector.load %arg8[%c0_14, %c0_15] : memref<16x1xf32, #tpu.memory_space<vmem>>, vector<16x1xf32>
    %30 = vector.broadcast %29 : vector<16x1xf32> to vector<16x128xf32>
    %31 = arith.mulf %30, %28 : vector<16x128xf32>
    %cst_16 = arith.constant dense<0.000000e+00> : vector<128xf32>
    %32 = vector.multi_reduction <add>, %31, %cst_16 [0] : vector<16x128xf32> to vector<128xf32>
    %33 = vector.shape_cast %32 : vector<128xf32> to vector<1x128xf32>
    %c0_17 = arith.constant 0 : index
    %c0_18 = arith.constant 0 : index
    %34 = vector.load %arg9[%c0_17, %c0_18] : memref<1x1xf32, #tpu.memory_space<vmem>>, vector<1x1xf32>
    %35 = vector.broadcast %34 : vector<1x1xf32> to vector<1x128xf32>
    %36 = arith.addf %33, %35 : vector<1x128xf32>
    %c0_19 = arith.constant 0 : index
    %c0_20 = arith.constant 0 : index
    %37 = vector.load %arg10[%c0_19, %c0_20] : memref<1x128xf32, #tpu.memory_space<vmem>>, vector<1x128xf32>
    tpu.vector_store %arg10[%c0_19, %c0_20], %36 {strides = array<i32>} : memref<1x128xf32, #tpu.memory_space<vmem>>, vector<1x128xf32>,
    return
  }
  func.func @transform_0(%arg0: i32) -> (i32, i32) {
    %c0_i32 = arith.constant 0 : i32
    %c0_i32_0 = arith.constant 0 : i32
    return %c0_i32, %arg0 : i32, i32
  }
  func.func @transform_1(%arg0: i32) -> (i32, i32) {
    %c0_i32 = arith.constant 0 : i32
    %c0_i32_0 = arith.constant 0 : i32
    %c0_i32_1 = arith.constant 0 : i32
    return %c0_i32, %c0_i32_0 : i32, i32
  }
  func.func @transform_2(%arg0: i32) -> (i32, i32) {
    %c0_i32 = arith.constant 0 : i32
    %c0_i32_0 = arith.constant 0 : i32
    %c0_i32_1 = arith.constant 0 : i32
    return %c0_i32, %c0_i32_0 : i32, i32
  }
  func.func @transform_3(%arg0: i32) -> (i32, i32) {
    %c0_i32 = arith.constant 0 : i32
    %c0_i32_0 = arith.constant 0 : i32
    %c0_i32_1 = arith.constant 0 : i32
    return %c0_i32, %c0_i32_0 : i32, i32
  }
  func.func @transform_4(%arg0: i32) -> (i32, i32) {
    %c0_i32 = arith.constant 0 : i32
    %c0_i32_0 = arith.constant 0 : i32
    %c0_i32_1 = arith.constant 0 : i32
    return %c0_i32, %c0_i32_0 : i32, i32
  }
  func.func @transform_5(%arg0: i32) -> (i32, i32) {
    %c0_i32 = arith.constant 0 : i32
    %c0_i32_0 = arith.constant 0 : i32
    %c0_i32_1 = arith.constant 0 : i32
    return %c0_i32, %c0_i32_0 : i32, i32
  }
  func.func @transform_6(%arg0: i32) -> (i32, i32) {
    %c0_i32 = arith.constant 0 : i32
    %c0_i32_0 = arith.constant 0 : i32
    %c0_i32_1 = arith.constant 0 : i32
    return %c0_i32, %c0_i32_0 : i32, i32
  }
  func.func @transform_7(%arg0: i32) -> (i32, i32) {
    %c0_i32 = arith.constant 0 : i32
    %c0_i32_0 = arith.constant 0 : i32
    %c0_i32_1 = arith.constant 0 : i32
    return %c0_i32, %c0_i32_0 : i32, i32
  }
  func.func @transform_8(%arg0: i32) -> (i32, i32) {
    %c0_i32 = arith.constant 0 : i32
    %c0_i32_0 = arith.constant 0 : i32
    %c0_i32_1 = arith.constant 0 : i32
    return %c0_i32, %c0_i32_0 : i32, i32
  }
  func.func @transform_9(%arg0: i32) -> (i32, i32) {
    %c0_i32 = arith.constant 0 : i32
    %c0_i32_0 = arith.constant 0 : i32
    return %c0_i32, %arg0 : i32, i32
  }
}

</mosaic_0001>

<llo_original>
// kernel: fixed_mlp.1
$region0: #{fixed_mlp.1}
  #allocation0 [shape = 'u32[]', space=smem, size = 0x4, offset = 0x4, fixed_abs, tag = 'smem constant byte address 0x4 - core index']
  #allocation1 [shape = 'u32[72,128]{1,0:T(1,128)}', space=vmem, size = 0x9000, scoped, tag = 'internal scratch']
  #allocation2 [shape = 'f32[1,1]{1,0:T(1,128)S(1)}', space=vmem, size = 0x200, scoped, tag = 'scoped memory for fixed_mlp.1']
  %s0 = inlined_call_operand.vmem [shape: f32[2,128], index: 0, kind: input, shape index: {}]
  %s1 = inlined_call_operand.vmem [shape: f32[8,2], index: 1, kind: input, shape index: {}]
  %s2 = inlined_call_operand.vmem [shape: f32[8,1], index: 2, kind: input, shape index: {}]
  %s3 = inlined_call_operand.vmem [shape: f32[16,8], index: 3, kind: input, shape index: {}]
  %s4 = inlined_call_operand.vmem [shape: f32[16,1], index: 4, kind: input, shape index: {}]
  %s5 = inlined_call_operand.vmem [shape: f32[16,16], index: 5, kind: input, shape index: {}]
  %s6 = inlined_call_operand.vmem [shape: f32[16,1], index: 6, kind: input, shape index: {}]
  %s7 = inlined_call_operand.vmem [shape: f32[16,1], index: 7, kind: input, shape index: {}]
  %s8 = inlined_call_operand.<no memory space> [shape: f32[1,1], index: 8, kind: input, shape index: {}]
  %s9 = inlined_call_operand.vmem [shape: f32[1,128], index: 9, kind: output, shape index: {}]
  %s10 = sld [smem:[#allocation0]]
  $region46: #{fixed_mlp.1} parent=0
    _
  %s12 = ssub.s32 1, %s10
  %s13 = scalar_select 0, %s12, %s10
  %v14 = vstv %s8
  %15 = vst [vmem:[#allocation2] sm:$0x1] %v14
  // Predicated region
  $region2: #{fixed_mlp.1} parent=0 // pred_check
    _
  $region3: #{fixed_mlp.1} parent=0 // pred_check_branch
    %17 = sbr.rel (0) target = $region5
  $region4: #{fixed_mlp.1} parent=0 // pred_region
    _
  $region5: #{fixed_mlp.1} parent=0 // pred_fallthru
    _
  // Predicated region
  $region6: #{fixed_mlp.1} parent=0 // pred_check
    _
  $region7: #{fixed_mlp.1} parent=0 // pred_check_branch
    %19 = sbr.rel (0) target = $region9
  $region8: #{fixed_mlp.1} parent=0 // pred_region
    _
  $region9: #{fixed_mlp.1} parent=0 // pred_fallthru
    _
  // Predicated region
  $region10: #{fixed_mlp.1} parent=0 // pred_check
    _
  $region11: #{fixed_mlp.1} parent=0 // pred_check_branch
    %21 = sbr.rel (0) target = $region13
  $region12: #{fixed_mlp.1} parent=0 // pred_region
    _
  $region13: #{fixed_mlp.1} parent=0 // pred_fallthru
    _
  // Predicated region
  $region14: #{fixed_mlp.1} parent=0 // pred_check
    _
  $region15: #{fixed_mlp.1} parent=0 // pred_check_branch
    %23 = sbr.rel (0) target = $region17
  $region16: #{fixed_mlp.1} parent=0 // pred_region
    _
  $region17: #{fixed_mlp.1} parent=0 // pred_fallthru
    _
  // Predicated region
  $region18: #{fixed_mlp.1} parent=0 // pred_check
    _
  $region19: #{fixed_mlp.1} parent=0 // pred_check_branch
    %25 = sbr.rel (0) target = $region21
  $region20: #{fixed_mlp.1} parent=0 // pred_region
    _
  $region21: #{fixed_mlp.1} parent=0 // pred_fallthru
    _
  // Predicated region
  $region22: #{fixed_mlp.1} parent=0 // pred_check
    _
  $region23: #{fixed_mlp.1} parent=0 // pred_check_branch
    %27 = sbr.rel (0) target = $region25
  $region24: #{fixed_mlp.1} parent=0 // pred_region
    _
  $region25: #{fixed_mlp.1} parent=0 // pred_fallthru
    _
  // Predicated region
  $region26: #{fixed_mlp.1} parent=0 // pred_check
    _
  $region27: #{fixed_mlp.1} parent=0 // pred_check_branch
    %29 = sbr.rel (0) target = $region29
  $region28: #{fixed_mlp.1} parent=0 // pred_region
    _
  $region29: #{fixed_mlp.1} parent=0 // pred_fallthru
    _
  // Predicated region
  $region30: #{fixed_mlp.1} parent=0 // pred_check
    _
  $region31: #{fixed_mlp.1} parent=0 // pred_check_branch
    %31 = sbr.rel (0) target = $region33
  $region32: #{fixed_mlp.1} parent=0 // pred_region
    _
  $region33: #{fixed_mlp.1} parent=0 // pred_fallthru
    _
  // Predicated region
  $region34: #{fixed_mlp.1} parent=0 // pred_check
    _
  $region35: #{fixed_mlp.1} parent=0 // pred_check_branch
    %33 = sbr.rel (0) target = $region37
  $region36: #{fixed_mlp.1} parent=0 // pred_region
    _
  $region37: #{fixed_mlp.1} parent=0 // pred_fallthru
    _
  %v34 = vld [vmem:[%s0] sm:$0x3]
  %v35 = vld [vmem:[%s1] sm:$0xff]
  %37 = vset.pattern.permute.xlu0 0
  %38 = vperm.xlu0 %37, %v35
  %v39 = vpop.permute.xlu0 %38
  %v41 = vperm.slane %v34, 0
  %v42 = vmul.f32 %v39, %v41
  %43 = vset.pattern.permute.xlu0 1
  %44 = vperm.xlu0 %43, %v35
  %v45 = vpop.permute.xlu0 %44
  %v47 = vperm.slane %v34, 1
  %v48 = vmul.f32 %v45, %v47
  %v49 = vadd.f32 %v42, %v48
  %v50 = vld [vmem:[%s2] sm:$0xff]
  %52 = vset.pattern.permute.xlu0 0
  %53 = vperm.xlu0 %52, %v50
  %v54 = vpop.permute.xlu0 %53
  %v56 = vadd.f32 %v49, %v54
  %v57 = vtanh.pop %v56
  %v58 = vld [vmem:[%s3] sm:$0xff]
  %v59 = vld [vmem:[%s3 + $0x8] sm:$0xff]
  %v60 = vld [vmem:[%s4] sm:$0xff]
  %v61 = vld [vmem:[%s4 + $0x8] sm:$0xff]
  %63 = vset.pattern.permute.xlu0 0
  %64 = vperm.xlu0 %63, %v60
  %v65 = vpop.permute.xlu0 %64
  %68 = vset.pattern.permute.xlu0 0
  %69 = vperm.xlu0 %68, %v61
  %v70 = vpop.permute.xlu0 %69
  %vm72 = vcmask 64512
  %v74 = vsel %vm72, %v58, 0
  %v77 = vsel %vm72, %v59, 0
  %79 = vmatpush.msra.mxu0 0.0
  %80 = vmatpush.msra.mxu0 0.0
  %81 = vmatpush.msra.mxu0 0.0
  %82 = vmatpush.msra.mxu0 0.0
  %83 = vmatpush.msra.mxu0 0.0
  %84 = vmatpush.msra.mxu0 0.0
  %85 = vmatpush.msra.mxu0 0.0
  %86 = vmatpush.msra.mxu0 0.0
  %87 = vmatpush.msra.mxu0 0.0
  %88 = vmatpush.msra.mxu0 0.0
  %89 = vmatpush.msra.mxu0 0.0
  %90 = vmatpush.msra.mxu0 0.0
  %91 = vmatpush.msra.mxu0 0.0
  %92 = vmatpush.msra.mxu0 0.0
  %93 = vmatpush.msra.mxu0 0.0
  %94 = vmatpush.msra.mxu0 %v57
  %95 = vmatmul.f32.gmra.mxu0 %v74
  %v96 = vpop.f32.mrf.mxu0
  %v97 = vadd.f32 %v65, %v96
  %98 = vmatmul.f32.gmra.mxu0 %v77
  %v99 = vpop.f32.mrf.mxu0
  %v100 = vadd.f32 %v70, %v99
  %101 = vdwg.mxu0
  %v102 = vtanh.pop %v97
  %v103 = vtanh.pop %v100
  %v104 = vld [vmem:[%s5] sm:$0xff]
  %v105 = vld [vmem:[%s5 + $0x8] sm:$0xff]
  %v106 = vld [vmem:[%s6] sm:$0xff]
  %v107 = vld [vmem:[%s6 + $0x8] sm:$0xff]
  %109 = vset.pattern.permute.xlu0 0
  %110 = vperm.xlu0 %109, %v106
  %v111 = vpop.permute.xlu0 %110
  %114 = vset.pattern.permute.xlu0 0
  %115 = vperm.xlu0 %114, %v107
  %v116 = vpop.permute.xlu0 %115
  %vm118 = vcmask 130048
  %v120 = vsel %vm118, %v104, 0
  %v123 = vsel %vm118, %v105, 0
  %125 = vmatpush.msra.mxu0 0.0
  %126 = vmatpush.msra.mxu0 0.0
  %127 = vmatpush.msra.mxu0 0.0
  %128 = vmatpush.msra.mxu0 0.0
  %129 = vmatpush.msra.mxu0 0.0
  %130 = vmatpush.msra.mxu0 0.0
  %131 = vmatpush.msra.mxu0 0.0
  %132 = vmatpush.msra.mxu0 0.0
  %133 = vmatpush.msra.mxu0 0.0
  %134 = vmatpush.msra.mxu0 0.0
  %135 = vmatpush.msra.mxu0 0.0
  %136 = vmatpush.msra.mxu0 0.0
  %137 = vmatpush.msra.mxu0 0.0
  %138 = vmatpush.msra.mxu0 0.0
  %139 = vmatpush.msra.mxu0 %v103
  %140 = vmatpush.msra.mxu0 %v102
  %141 = vmatmul.f32.gmra.mxu0 %v120
  %v142 = vpop.f32.mrf.mxu0
  %v143 = vadd.f32 %v111, %v142
  %144 = vmatmul.f32.gmra.mxu0 %v123
  %v145 = vpop.f32.mrf.mxu0
  %v146 = vadd.f32 %v116, %v145
  %147 = vdwg.mxu0
  %v148 = vtanh.pop %v143
  %v149 = vtanh.pop %v146
  %v150 = vld [vmem:[%s7] sm:$0xff]
  %v151 = vld [vmem:[%s7 + $0x8] sm:$0xff]
  %153 = vset.pattern.permute.xlu0 0
  %154 = vperm.xlu0 %153, %v150
  %v155 = vpop.permute.xlu0 %154
  %158 = vset.pattern.permute.xlu0 0
  %159 = vperm.xlu0 %158, %v151
  %v160 = vpop.permute.xlu0 %159
  %v162 = vmul.f32 %v155, %v148
  %v163 = vmul.f32 %v160, %v149
  %v164 = vadd.f32 %v162, %v163
  %v165 = vrot.slane %v164, 4
  %v166 = vadd.f32 %v164, %v165
  %v167 = vrot.slane %v166, 2
  %v168 = vadd.f32 %v166, %v167
  %v169 = vrot.slane %v168, 1
  %v170 = vadd.f32 %v168, %v169
  %v171 = vld [vmem:[#allocation2] sm:$0x1]
  %173 = vset.pattern.permute.xlu0 0
  %174 = vperm.xlu0 %173, %v171
  %v175 = vpop.permute.xlu0 %174
  %v177 = vperm.slane %v175, 0
  %v178 = vadd.f32 %v170, %v177
  %179 = vst [vmem:[%s9] sm:$0x1] %v178
  // Predicated region
  $region38: #{fixed_mlp.1} parent=0 // pred_check
    _
  $region39: #{fixed_mlp.1} parent=0 // pred_check_branch
    %181 = sbr.rel (0) target = $region41
  $region40: #{fixed_mlp.1} parent=0 // pred_region
    _
  $region41: #{fixed_mlp.1} parent=0 // pred_fallthru
    _
  // Predicated region
  $region42: #{fixed_mlp.1} parent=0 // pred_check
    _
  $region43: #{fixed_mlp.1} parent=0 // pred_check_branch
    %183 = sbr.rel (0) target = $region45
  $region44: #{fixed_mlp.1} parent=0 // pred_region
    _
  $region45: #{fixed_mlp.1} parent=0 // pred_fallthru
    _

</llo_original>
